<compile_context>
chip_gen: v7x
topology: tpu7x:2x2x1
jax: 0.10.0
libtpu: 0.0.40
codegen_flags: <defaults>
</compile_context>

<pallas_src>
import functools

import jax
import jax.numpy as jnp
from jax.experimental import pallas as pl
from jax.experimental.pallas import tpu as pltpu


_LANES = 128
# Budget for BOTH pipeline buffers of the x tile. Conservative so it works on
# v7x (64 MiB physical VMEM) as well as v5e/v6e (128 MiB).
_DEFAULT_X_TILE_BUDGET = 24 << 20
# Cap on the spatial tile so the unrolled 128-lane chunk loop stays small
# (<= 64 chunks) while still amortizing the ~0.35 us/step grid overhead.
_MAX_SPATIAL_TILE = 8192


# ----------------------------------------------------------------------------
# Shared epilogue: folded fc + sigmoid on the pooled column vectors.
# ----------------------------------------------------------------------------
def _fc_sigmoid(avg, mx, w1, w2, out_dtype):
    # W2@relu(W1@avg) + W2@relu(W1@mx) == W2@(relu(W1@avg) + relu(W1@mx))
    h_avg = jnp.maximum(jnp.dot(w1, avg, preferred_element_type=jnp.float32), 0.0)
    h_max = jnp.maximum(jnp.dot(w1, mx, preferred_element_type=jnp.float32), 0.0)
    y = jnp.dot(w2, h_avg + h_max, preferred_element_type=jnp.float32)   # (C, 1)
    return jax.nn.sigmoid(y).astype(out_dtype)


# ----------------------------------------------------------------------------
# Path 1: single full-HW block per batch element (grid = (B,), no scratch).
# ----------------------------------------------------------------------------
def _make_single_block_kernel(hw: int):
    inv_hw = 1.0 / float(hw)

    def kernel(x_ref, w1_ref, w2_ref, o_ref):
        xb = x_ref[0].astype(jnp.float32)                        # (C, HW)
        avg = jnp.sum(xb, axis=-1, keepdims=True) * inv_hw       # (C, 1)
        mx = jnp.max(xb, axis=-1, keepdims=True)                 # (C, 1)
        o_ref[0] = _fc_sigmoid(avg, mx, w1_ref[...], w2_ref[...], o_ref.dtype)

    return kernel


# ----------------------------------------------------------------------------
# Path 2: spatial reduction tiled over the last grid axis (grid = (B, steps)),
# lane-wide running accumulators in VMEM scratch, masked ragged tail.
# ----------------------------------------------------------------------------
def _make_tiled_kernel(hw: int, ts: int):
    inv_hw = 1.0 / float(hw)
    num_chunks = ts // _LANES                 # ts is a multiple of 128 here
    nsteps = pl.cdiv(hw, ts)
    tail_len = hw - (nsteps - 1) * ts         # valid columns in the last tile
    has_tail = tail_len != ts

    def kernel(x_ref, w1_ref, w2_ref, o_ref, sum_acc, max_acc):
        s = pl.program_id(1)
        last = pl.num_programs(1) - 1

        @pl.when(s == 0)
        def _():
            sum_acc[...] = jnp.zeros_like(sum_acc)
            max_acc[...] = jnp.full_like(max_acc, -jnp.inf)

        def accumulate(masked):
            xb = x_ref[0].astype(jnp.float32)                    # (C, ts)
            if masked:
                col = jax.lax.broadcasted_iota(jnp.int32, (1, ts), 1)
                valid = col < tail_len
                xb_s = jnp.where(valid, xb, 0.0)
                xb_m = jnp.where(valid, xb, -jnp.inf)
            else:
                xb_s, xb_m = xb, xb
            # Pure VALU accumulation over 128-lane chunks; the cross-lane
            # (XLU) reduce happens once, in the epilogue.
            ps = xb_s[:, 0:_LANES]
            pm = xb_m[:, 0:_LANES]
            for j in range(1, num_chunks):
                lo = j * _LANES
                ps = ps + xb_s[:, lo:lo + _LANES]
                pm = jnp.maximum(pm, xb_m[:, lo:lo + _LANES])
            sum_acc[...] = sum_acc[...] + ps
            max_acc[...] = jnp.maximum(max_acc[...], pm)

        if has_tail:
            @pl.when(s < last)
            def _():
                accumulate(False)

            @pl.when(s == last)
            def _():
                accumulate(True)
        else:
            accumulate(False)

        @pl.when(s == last)
        def _():
            avg = jnp.sum(sum_acc[...], axis=-1, keepdims=True) * inv_hw  # (C, 1)
            mx = jnp.max(max_acc[...], axis=-1, keepdims=True)            # (C, 1)
            o_ref[0] = _fc_sigmoid(avg, mx, w1_ref[...], w2_ref[...], o_ref.dtype)

    return kernel


# ----------------------------------------------------------------------------
# Tile selection: full HW if it fits the double-buffer budget, else the largest
# multiple-of-128 tile that does (no divisibility requirement -> masked tail).
# ----------------------------------------------------------------------------
def _choose_spatial_tile(hw: int, c: int, itemsize: int, budget: int):
    """Returns (ts, single_block)."""
    if hw < _LANES:
        return hw, True
    full_tile_bytes = 2 * c * hw * itemsize       # two pipeline buffers
    if hw % _LANES != 0 and full_tile_bytes <= budget and hw <= _MAX_SPATIAL_TILE:
        # No clean multiple-of-128 tiling, but the full row fits: one
        # contiguous linear DMA per batch element.
        return hw, True
    max_by_budget = max(budget // (2 * c * itemsize), _LANES)
    ts = min(max_by_budget, hw, _MAX_SPATIAL_TILE)
    ts = max(_LANES, (ts // _LANES) * _LANES)
    return ts, False


# ----------------------------------------------------------------------------
# Wrapper: ChannelAttention.forward
# ----------------------------------------------------------------------------
@functools.partial(jax.jit, static_argnames=("x_tile_budget_bytes",))
def channel_attention_forward(x, w1, w2, *,
                              x_tile_budget_bytes=_DEFAULT_X_TILE_BUDGET):
    """x: (B, C, H, W); w1: (C//ratio, C); w2: (C, C//ratio).

    Returns sigmoid(fc(avg_pool(x)) + fc(max_pool(x))) of shape (B, C, 1, 1).
    """
    # TODO(synk): for B == 1 on v7x (2 TensorCores) split the spatial reduction
    # across a leading size-2 "parallel" grid axis with per-core partials and
    # combine in the wrapper; with B >= 2 the batch axis already feeds both cores.
    B, C, H, W = x.shape
    hidden = w1.shape[0]
    HW = H * W
    itemsize = jnp.dtype(x.dtype).itemsize

    ts, single_block = _choose_spatial_tile(HW, C, itemsize, x_tile_budget_bytes)

    x_r = x.reshape(B, C, HW)   # keeps NCHW memory order; no data movement

    # Explicit VMEM limit: raises v5e's 16 MiB default scoped limit when needed
    # and stays under v7x's 64 MiB physical VMEM.
    w_bytes = (w1.size + w2.size) * jnp.dtype(w1.dtype).itemsize
    x_tile_bytes = C * ts * itemsize
    scratch_bytes = 2 * C * _LANES * 4
    vmem_limit = int(min(2 * x_tile_bytes + 2 * w_bytes + scratch_bytes + (4 << 20),
                         64 << 20))

    if single_block:
        grid = (B,)
        in_specs = [
            pl.BlockSpec((1, C, HW), lambda b: (b, 0, 0)),      # x (one linear DMA)
            pl.BlockSpec((hidden, C), lambda b: (0, 0)),        # W1 (resident)
            pl.BlockSpec((C, hidden), lambda b: (0, 0)),        # W2 (resident)
        ]
        out_specs = pl.BlockSpec((1, C, 1), lambda b: (b, 0, 0))
        scratch_shapes = []
        kernel = _make_single_block_kernel(HW)
        dim_sem = ("parallel",)
    else:
        grid = (B, pl.cdiv(HW, ts))
        in_specs = [
            pl.BlockSpec((1, C, ts), lambda b, s: (b, 0, s)),   # x tile
            pl.BlockSpec((hidden, C), lambda b, s: (0, 0)),     # W1 (resident)
            pl.BlockSpec((C, hidden), lambda b, s: (0, 0)),     # W2 (resident)
        ]
        out_specs = pl.BlockSpec((1, C, 1), lambda b, s: (b, 0, 0))
        scratch_shapes = [
            pltpu.VMEM((C, _LANES), jnp.float32),   # lane-wide running sum
            pltpu.VMEM((C, _LANES), jnp.float32),   # lane-wide running max
        ]
        kernel = _make_tiled_kernel(HW, ts)
        dim_sem = ("parallel", "arbitrary")

    out = pl.pallas_call(
        kernel,
        out_shape=jax.ShapeDtypeStruct((B, C, 1), x.dtype),
        grid_spec=pltpu.PrefetchScalarGridSpec(
            num_scalar_prefetch=0,
            grid=grid,
            in_specs=in_specs,
            out_specs=out_specs,
            scratch_shapes=scratch_shapes,
        ),
        compiler_params=pltpu.CompilerParams(
            dimension_semantics=dim_sem,
            vmem_limit_bytes=vmem_limit,
        ),
    )(x_r, w1, w2)

    return out.reshape(B, C, 1, 1)


# ----------------------------------------------------------------------------
# Main: deterministic small-shape tests vs. a pure-JAX reference
# ----------------------------------------------------------------------------
if __name__ == "__main__":
    def reference(x, w1, w2):
        avg_p = x.mean(axis=(2, 3))                  # (B, C)
        max_p = x.max(axis=(2, 3))                   # (B, C)

        def fc(v):
            return jnp.maximum(v @ w1.T, 0.0) @ w2.T

        return jax.nn.sigmoid(fc(avg_p) + fc(max_p))[..., None, None]

    # ChannelAttention(in_planes=64, ratio=16): hidden = 4.  (ratio=16 keeps the
    # module's hardcoded `in_planes // 16` in the second conv consistent.)
    ratio = 16
    configs = [
        # (B, C, H, W, x_tile_budget)  -- exercises all kernel paths:
        (2, 64, 16, 16, _DEFAULT_X_TILE_BUDGET),  # tiled path, ts == HW (mult of 128)
        (2, 64, 9, 9, _DEFAULT_X_TILE_BUDGET),    # single-block path (HW < 128)
        (2, 64, 20, 10, 64 << 10),                # tiled path with masked ragged tail
    ]

    key = jax.random.PRNGKey(0)
    for (B, C, H, W, budget) in configs:
        hidden = C // ratio
        kx, k1, k2, key = jax.random.split(key, 4)
        x = jax.random.normal(kx, (B, C, H, W), dtype=jnp.float32)
        w1 = 0.1 * jax.random.normal(k1, (hidden, C), dtype=jnp.float32)  # C -> hidden
        w2 = 0.1 * jax.random.normal(k2, (C, hidden), dtype=jnp.float32)  # hidden -> C

        out = channel_attention_forward(x, w1, w2, x_tile_budget_bytes=budget)
        out = jax.block_until_ready(out)

        ref = reference(x, w1, w2)
        assert out.shape == (B, C, 1, 1), out.shape
        assert jnp.allclose(out, ref, atol=1e-5, rtol=1e-5), (
            (B, C, H, W), float(jnp.max(jnp.abs(out - ref)))
        )

    print("KERNEL_OK")
</pallas_src>

<mosaic_0001>
module attributes {stable_mosaic.version = 11 : i64} {
  func.func @kernel(%arg0: i32, %arg1: i32, %arg2: memref<1x64x256xf32, #tpu.memory_space<vmem>>, %arg3: memref<4x64xf32, #tpu.memory_space<vmem>>, %arg4: memref<64x4xf32, #tpu.memory_space<vmem>>, %arg5: memref<1x64x1xf32, #tpu.memory_space<vmem>>, %arg6: memref<64x128xf32, #tpu.memory_space<vmem>>, %arg7: memref<64x128xf32, #tpu.memory_space<vmem>>) attributes {dimension_semantics = [#tpu.dimension_semantics<parallel>, #tpu.dimension_semantics<arbitrary>], iteration_bounds = array<i64: 2, 1>, scalar_prefetch = 0 : i64, scratch_operands = 2 : i64, tpu.core_type = #tpu.core_type<tc>, window_params = [{transform_indices = @transform_0, window_bounds = array<i64: 1, 64, 256>}, {pipeline_mode = #tpu.pipeline_mode<synchronous>, transform_indices = @transform_1, window_bounds = array<i64: 4, 64>}, {pipeline_mode = #tpu.pipeline_mode<synchronous>, transform_indices = @transform_2, window_bounds = array<i64: 64, 4>}, {transform_indices = @transform_3, window_bounds = array<i64: 1, 64, 1>}]} {
    %c0_i32 = arith.constant 0 : i32
    %0 = arith.cmpi eq, %arg1, %c0_i32 : i32
    %1 = arith.extui %0 : i1 to i32
    %c0_i32_0 = arith.constant 0 : i32
    %2 = arith.cmpi ne, %1, %c0_i32_0 : i32
    scf.if %2 {
      %cst = arith.constant 0.000000e+00 : f32
      %20 = vector.broadcast %cst : f32 to vector<64x128xf32>
      %c0_13 = arith.constant 0 : index
      %c0_14 = arith.constant 0 : index
      %21 = vector.load %arg6[%c0_13, %c0_14] : memref<64x128xf32, #tpu.memory_space<vmem>>, vector<64x128xf32>
      tpu.vector_store %arg6[%c0_13, %c0_14], %20 {strides = array<i32>} : memref<64x128xf32, #tpu.memory_space<vmem>>, vector<64x128xf32>,
      %cst_15 = arith.constant 0xFF800000 : f32
      %22 = vector.broadcast %cst_15 : f32 to vector<64x128xf32>
      %c0_16 = arith.constant 0 : index
      %c0_17 = arith.constant 0 : index
      %23 = vector.load %arg7[%c0_16, %c0_17] : memref<64x128xf32, #tpu.memory_space<vmem>>, vector<64x128xf32>
      tpu.vector_store %arg7[%c0_16, %c0_17], %22 {strides = array<i32>} : memref<64x128xf32, #tpu.memory_space<vmem>>, vector<64x128xf32>,
    } else {
    }
    %c0 = arith.constant 0 : index
    %c0_1 = arith.constant 0 : index
    %c0_2 = arith.constant 0 : index
    %3 = vector.load %arg2[%c0, %c0_1, %c0_2] : memref<1x64x256xf32, #tpu.memory_space<vmem>>, vector<1x64x256xf32>
    %4 = vector.shape_cast %3 : vector<1x64x256xf32> to vector<64x256xf32>
    %5 = vector.extract_strided_slice %4 {offsets = [0, 0], sizes = [64, 128], strides = [1, 1]} : vector<64x256xf32> to vector<64x128xf32>
    %6 = vector.extract_strided_slice %4 {offsets = [0, 0], sizes = [64, 128], strides = [1, 1]} : vector<64x256xf32> to vector<64x128xf32>
    %7 = vector.extract_strided_slice %4 {offsets = [0, 128], sizes = [64, 128], strides = [1, 1]} : vector<64x256xf32> to vector<64x128xf32>
    %8 = arith.addf %5, %7 : vector<64x128xf32>
    %9 = vector.extract_strided_slice %4 {offsets = [0, 128], sizes = [64, 128], strides = [1, 1]} : vector<64x256xf32> to vector<64x128xf32>
    %10 = arith.maximumf %6, %9 : vector<64x128xf32>
    %c0_3 = arith.constant 0 : index
    %c0_4 = arith.constant 0 : index
    %11 = vector.load %arg6[%c0_3, %c0_4] : memref<64x128xf32, #tpu.memory_space<vmem>>, vector<64x128xf32>
    %12 = arith.addf %11, %8 : vector<64x128xf32>
    %c0_5 = arith.constant 0 : index
    %c0_6 = arith.constant 0 : index
    %13 = vector.load %arg6[%c0_5, %c0_6] : memref<64x128xf32, #tpu.memory_space<vmem>>, vector<64x128xf32>
    tpu.vector_store %arg6[%c0_5, %c0_6], %12 {strides = array<i32>} : memref<64x128xf32, #tpu.memory_space<vmem>>, vector<64x128xf32>,
    %c0_7 = arith.constant 0 : index
    %c0_8 = arith.constant 0 : index
    %14 = vector.load %arg7[%c0_7, %c0_8] : memref<64x128xf32, #tpu.memory_space<vmem>>, vector<64x128xf32>
    %15 = arith.maximumf %14, %10 : vector<64x128xf32>
    %c0_9 = arith.constant 0 : index
    %c0_10 = arith.constant 0 : index
    %16 = vector.load %arg7[%c0_9, %c0_10] : memref<64x128xf32, #tpu.memory_space<vmem>>, vector<64x128xf32>
    tpu.vector_store %arg7[%c0_9, %c0_10], %15 {strides = array<i32>} : memref<64x128xf32, #tpu.memory_space<vmem>>, vector<64x128xf32>,
    %c0_i32_11 = arith.constant 0 : i32
    %17 = arith.cmpi eq, %arg1, %c0_i32_11 : i32
    %18 = arith.extui %17 : i1 to i32
    %c0_i32_12 = arith.constant 0 : i32
    %19 = arith.cmpi ne, %18, %c0_i32_12 : i32
    scf.if %19 {
      %c0_13 = arith.constant 0 : index
      %c0_14 = arith.constant 0 : index
      %20 = vector.load %arg6[%c0_13, %c0_14] : memref<64x128xf32, #tpu.memory_space<vmem>>, vector<64x128xf32>
      %cst = arith.constant dense<0.000000e+00> : vector<64xf32>
      %21 = vector.multi_reduction <add>, %20, %cst [1] : vector<64x128xf32> to vector<64xf32>
      %22 = vector.shape_cast %21 : vector<64xf32> to vector<64x1xf32>
      %cst_15 = arith.constant 3.906250e-03 : f32
      %23 = vector.broadcast %cst_15 : f32 to vector<64x1xf32>
      %24 = arith.mulf %22, %23 : vector<64x1xf32>
      %c0_16 = arith.constant 0 : index
      %c0_17 = arith.constant 0 : index
      %25 = vector.load %arg7[%c0_16, %c0_17] : memref<64x128xf32, #tpu.memory_space<vmem>>, vector<64x128xf32>
      %cst_18 = arith.constant dense<0xFF800000> : vector<64xf32>
      %26 = vector.multi_reduction <maximumf>, %25, %cst_18 [1] : vector<64x128xf32> to vector<64xf32>
      %27 = vector.shape_cast %26 : vector<64xf32> to vector<64x1xf32>
      %c0_19 = arith.constant 0 : index
      %c0_20 = arith.constant 0 : index
      %28 = vector.load %arg3[%c0_19, %c0_20] : memref<4x64xf32, #tpu.memory_space<vmem>>, vector<4x64xf32>
      %c0_21 = arith.constant 0 : index
      %c0_22 = arith.constant 0 : index
      %29 = vector.load %arg4[%c0_21, %c0_22] : memref<64x4xf32, #tpu.memory_space<vmem>>, vector<64x4xf32>
      %cst_23 = arith.constant dense<0.000000e+00> : vector<4x1xf32>
      %30 = tpu.matmul %28, %24, %cst_23 {dimension_numbers = #tpu.dot_dimension_numbers<[1], [0], [0], [1], [0, 0, 1, 1], [], []>} : vector<4x64xf32>, vector<64x1xf32>, vector<4x1xf32> -> vector<4x1xf32>
      %cst_24 = arith.constant 0.000000e+00 : f32
      %31 = vector.broadcast %cst_24 : f32 to vector<4x1xf32>
      %32 = arith.maximumf %30, %31 : vector<4x1xf32>
      %cst_25 = arith.constant dense<0.000000e+00> : vector<4x1xf32>
      %33 = tpu.matmul %28, %27, %cst_25 {dimension_numbers = #tpu.dot_dimension_numbers<[1], [0], [0], [1], [0, 0, 1, 1], [], []>} : vector<4x64xf32>, vector<64x1xf32>, vector<4x1xf32> -> vector<4x1xf32>
      %cst_26 = arith.constant 0.000000e+00 : f32
      %34 = vector.broadcast %cst_26 : f32 to vector<4x1xf32>
      %35 = arith.maximumf %33, %34 : vector<4x1xf32>
      %36 = arith.addf %32, %35 : vector<4x1xf32>
      %cst_27 = arith.constant dense<0.000000e+00> : vector<64x1xf32>
      %37 = tpu.matmul %29, %36, %cst_27 {dimension_numbers = #tpu.dot_dimension_numbers<[1], [0], [0], [1], [0, 0, 1, 1], [], []>} : vector<64x4xf32>, vector<4x1xf32>, vector<64x1xf32> -> vector<64x1xf32>
      %38 = arith.negf %37 : vector<64x1xf32>
      %39 = math.exp %38 : vector<64x1xf32>
      %cst_28 = arith.constant 1.000000e+00 : f32
      %40 = vector.broadcast %cst_28 : f32 to vector<64x1xf32>
      %41 = arith.addf %40, %39 : vector<64x1xf32>
      %42 = arith.divf %40, %41 : vector<64x1xf32>
      %c0_29 = arith.constant 0 : index
      %c0_30 = arith.constant 0 : index
      %c0_31 = arith.constant 0 : index
      %43 = vector.load %arg5[%c0_29, %c0_30, %c0_31] : memref<1x64x1xf32, #tpu.memory_space<vmem>>, vector<1x64x1xf32>
      %44 = vector.shape_cast %43 : vector<1x64x1xf32> to vector<64x1xf32>
      %45 = vector.shape_cast %42 : vector<64x1xf32> to vector<1x64x1xf32>
      tpu.vector_store %arg5[%c0_29, %c0_30, %c0_31], %45 {strides = array<i32>} : memref<1x64x1xf32, #tpu.memory_space<vmem>>, vector<1x64x1xf32>,
    } else {
    }
    return
  }
  func.func @transform_0(%arg0: i32, %arg1: i32) -> (i32, i32, i32) {
    %c0_i32 = arith.constant 0 : i32
    %c0_i32_0 = arith.constant 0 : i32
    return %arg0, %c0_i32, %arg1 : i32, i32, i32
  }
  func.func @transform_1(%arg0: i32, %arg1: i32) -> (i32, i32) {
    %c0_i32 = arith.constant 0 : i32
    %c0_i32_0 = arith.constant 0 : i32
    %c0_i32_1 = arith.constant 0 : i32
    return %c0_i32, %c0_i32_0 : i32, i32
  }
  func.func @transform_2(%arg0: i32, %arg1: i32) -> (i32, i32) {
    %c0_i32 = arith.constant 0 : i32
    %c0_i32_0 = arith.constant 0 : i32
    %c0_i32_1 = arith.constant 0 : i32
    return %c0_i32, %c0_i32_0 : i32, i32
  }
  func.func @transform_3(%arg0: i32, %arg1: i32) -> (i32, i32, i32) {
    %c0_i32 = arith.constant 0 : i32
    %c0_i32_0 = arith.constant 0 : i32
    %c0_i32_1 = arith.constant 0 : i32
    return %arg0, %c0_i32, %c0_i32_0 : i32, i32, i32
  }
}

</mosaic_0001>

<llo_original>
// kernel: channel_attention_forward.1
$region0: #{channel_attention_forward.1}
  #allocation0 [shape = 'u32[]', space=smem, size = 0x4, offset = 0x4, fixed_abs, tag = 'smem constant byte address 0x4 - core index']
  #allocation1 [shape = 'u32[144,128]{1,0:T(1,128)}', space=vmem, size = 0x12000, scoped, tag = 'internal scratch']
  #allocation2 [shape = 'f32[64,128]{1,0:T(8,128)}', space=vmem, size = 0x8000, scoped, tag = 'scratch operand']
  #allocation3 [shape = 'f32[64,128]{1,0:T(8,128)}', space=vmem, size = 0x8000, scoped, tag = 'scratch operand']
  %s0 = inlined_call_operand.vmem [shape: f32[2,64,256], index: 0, kind: input, shape index: {}]
  %s1 = inlined_call_operand.vmem [shape: f32[4,64], index: 1, kind: input, shape index: {}]
  %s2 = inlined_call_operand.vmem [shape: f32[64,4], index: 2, kind: input, shape index: {}]
  %s3 = inlined_call_operand.vmem [shape: f32[2,64,1], index: 3, kind: output, shape index: {}]
  %s4 = sld [smem:[#allocation0]]
  $region53: #{channel_attention_forward.1} parent=0
    _
  %s6 = ssub.s32 1, %s4
  %s7 = scalar_select 0, %s6, %s4
  loop: start=0, step=1, limit=4
  $region2: #{channel_attention_forward.1} parent=0 // loop_pre_header
    _
  $region3: #{channel_attention_forward.1} parent=0 // loop_header
    %s9 = sphi 0, %s13
    %p10 = scmp.ge.s32.totalorder %s9, 4
    %s16 = sphi 0, %s28
    %s17 = sphi 0, %s24
    %s18 = sphi 0, %s16
    %s19 = sphi 0, %s17
    %s20 = sphi 0, %s18
    %s21 = sphi 0, %s19
    %s33 = sphi 0, %s35
    %s36 = sphi 0, %s33
    %s37 = sphi 0, %s36
    %s53 = sphi 0, %s37
    %s57 = sphi 0, %s57
    %s59 = sphi 0, %s57
    %s60 = sphi 0, %s59
    %s74 = sphi 0, %s60
    %s78 = sphi 0, %s78
    %s80 = sphi 0, %s78
    %s81 = sphi 0, %s80
    %s95 = sphi 0, %s81
    %s101 = sphi 0, %s103
    %s104 = sphi 0, %s101
    %s105 = sphi 0, %s104
    %s121 = sphi 0, %s105
  $region4: #{channel_attention_forward.1} parent=0 // loop_header_branch
    %12 = sbr.rel (%p10) target = $region8
  $region5: #{channel_attention_forward.1} parent=0 // loop_body
    %s14 = ssub.s32 %s9, 1
    %s15 = ssub.s32 %s9, 2
    %s22 = sadd.s32 1, %s17
    %p23 = scmp.ge.s32.totalorder %s22, 1
    %s24 = scalar_select %p23, 0, %s22
    %s25 = sadd.s32 1, %s16
    %s26 = scalar_select %p23, %s25, %s16
    %p27 = scmp.ge.s32.totalorder %s26, 2
    %s28 = scalar_select %p27, 0, %s26
    %s29 = ssub.s32 %s16, %s28
    %s30 = ssub.s32 %s17, %s24
    %s31 = sor.u32 %s29, %s30
    %p32 = scmp.eq.s32.totalorder %s31, 0
    %s34 = sadd.s32 %s33, 1
    %s35 = scalar_select %p32, %s33, %s34
    %p38 = pneg %p32
    %p39 = scmp.eq.s32.totalorder %s9, 1
    %p40 = por %p38, %p39
    %p41 = scmp.ne.s32.totalorder %s33, %s36
    %p42 = scmp.eq.s32.totalorder %s9, 0
    %p43 = por %p41, %p42
    %p44 = scmp.ne.s32.totalorder %s33, %s36
    %p45 = scmp.eq.s32.totalorder %s14, 1
    %p46 = por %p44, %p45
    %p47 = scmp.ne.s32.totalorder %s36, %s37
    %p48 = scmp.eq.s32.totalorder %s14, 0
    %p49 = por %p47, %p48
    %p50 = scmp.ne.s32.totalorder %s36, %s37
    %p51 = scmp.eq.s32.totalorder %s15, 1
    %p52 = por %p50, %p51
    %p54 = scmp.ne.s32.totalorder %s37, %s53
    %p55 = scmp.eq.s32.totalorder %s15, 0
    %p56 = por %p54, %p55
    %s58 = sadd.s32 %s57, 1
    %p61 = scmp.eq.s32.totalorder %s9, 1
    %p62 = scmp.ne.s32.totalorder %s57, %s59
    %p63 = scmp.eq.s32.totalorder %s9, 0
    %p64 = por %p62, %p63
    %p65 = scmp.ne.s32.totalorder %s57, %s59
    %p66 = scmp.eq.s32.totalorder %s14, 1
    %p67 = por %p65, %p66
    %p68 = scmp.ne.s32.totalorder %s59, %s60
    %p69 = scmp.eq.s32.totalorder %s14, 0
    %p70 = por %p68, %p69
    %p71 = scmp.ne.s32.totalorder %s59, %s60
    %p72 = scmp.eq.s32.totalorder %s15, 1
    %p73 = por %p71, %p72
    %p75 = scmp.ne.s32.totalorder %s60, %s74
    %p76 = scmp.eq.s32.totalorder %s15, 0
    %p77 = por %p75, %p76
    %s79 = sadd.s32 %s78, 1
    %p82 = scmp.eq.s32.totalorder %s9, 1
    %p83 = scmp.ne.s32.totalorder %s78, %s80
    %p84 = scmp.eq.s32.totalorder %s9, 0
    %p85 = por %p83, %p84
    %p86 = scmp.ne.s32.totalorder %s78, %s80
    %p87 = scmp.eq.s32.totalorder %s14, 1
    %p88 = por %p86, %p87
    %p89 = scmp.ne.s32.totalorder %s80, %s81
    %p90 = scmp.eq.s32.totalorder %s14, 0
    %p91 = por %p89, %p90
    %p92 = scmp.ne.s32.totalorder %s80, %s81
    %p93 = scmp.eq.s32.totalorder %s15, 1
    %p94 = por %p92, %p93
    %p96 = scmp.ne.s32.totalorder %s81, %s95
    %p97 = scmp.eq.s32.totalorder %s15, 0
    %p98 = por %p96, %p97
    %s99 = ssub.s32 %s16, %s28
    %p100 = scmp.eq.s32.totalorder %s99, 0
    %s102 = sadd.s32 %s101, 1
    %s103 = scalar_select %p100, %s101, %s102
    %p106 = pneg %p100
    %p107 = scmp.eq.s32.totalorder %s9, 1
    %p108 = por %p106, %p107
    %p109 = scmp.ne.s32.totalorder %s101, %s104
    %p110 = scmp.eq.s32.totalorder %s9, 0
    %p111 = por %p109, %p110
    %p112 = scmp.ne.s32.totalorder %s101, %s104
    %p113 = scmp.eq.s32.totalorder %s14, 1
    %p114 = por %p112, %p113
    %p115 = scmp.ne.s32.totalorder %s104, %s105
    %p116 = scmp.eq.s32.totalorder %s14, 0
    %p117 = por %p115, %p116
    %p118 = scmp.ne.s32.totalorder %s104, %s105
    %p119 = scmp.eq.s32.totalorder %s15, 1
    %p120 = por %p118, %p119
    %p122 = scmp.ne.s32.totalorder %s105, %s121
    %p123 = scmp.eq.s32.totalorder %s15, 0
    %p124 = por %p122, %p123
    %p125 = scmp.le.s32.totalorder 1, %s9
    %p126 = scmp.lt.s32.totalorder %s9, 3
    %p127 = pnand %p125, %p126
    %p128 = pneg %p127
    // Predicated region
    $region9: #{channel_attention_forward.1} parent=5 // pred_check
      _
    $region10: #{channel_attention_forward.1} parent=5 // pred_check_branch
      %130 = sbr.rel (%p127) target = $region12
    $region11: #{channel_attention_forward.1} parent=5 // pred_region
      %s131 = ssub.s32 %s9, 1
      // Predicated region
      $region13: #{channel_attention_forward.1} parent=11 // pred_check
        %p132 = pneg %p70
      $region14: #{channel_attention_forward.1} parent=11 // pred_check_branch
        %134 = sbr.rel (%p132) target = $region16
      $region15: #{channel_attention_forward.1} parent=11 // pred_region
        _
      $region16: #{channel_attention_forward.1} parent=11 // pred_fallthru
        _
      // Predicated region
      $region17: #{channel_attention_forward.1} parent=11 // pred_check
        %p135 = pneg %p91
      $region18: #{channel_attention_forward.1} parent=11 // pred_check_branch
        %137 = sbr.rel (%p135) target = $region20
      $region19: #{channel_attention_forward.1} parent=11 // pred_region
        _
      $region20: #{channel_attention_forward.1} parent=11 // pred_fallthru
        _
    $region12: #{channel_attention_forward.1} parent=5 // pred_fallthru
      _
    %p138 = scmp.lt.s32.totalorder %s9, 2
    // Predicated region
    $region21: #{channel_attention_forward.1} parent=5 // pred_check
      %p139 = pneg %p138
    $region22: #{channel_attention_forward.1} parent=5 // pred_check_branch
      %141 = sbr.rel (%p139) target = $region24
    $region23: #{channel_attention_forward.1} parent=5 // pred_region
      // Predicated region
      $region25: #{channel_attention_forward.1} parent=23 // pred_check
        %p142 = pneg %p43
      $region26: #{channel_attention_forward.1} parent=23 // pred_check_branch
        %144 = sbr.rel (%p142) target = $region28
      $region27: #{channel_attention_forward.1} parent=23 // pred_region
        %s145 = smul.u32 2, %s17
        %p146 = scmp.lt.s32.totalorder %s16, 1
        %s147 = scalar_select %p146, %s16, 1
        %p148 = scmp.lt.s32.totalorder %s145, 1
        %s149 = scalar_select %p148, %s145, 1
        %s150 = smul.addr %s147, 16
        %s151 = sadd.s32 %s149, %s150
        %s152 = smul.addr %s151, 8
        %s153 = scalar_lea.vmem %s0, %s152
        %s154 = smul.u32 2, %s17
      $region28: #{channel_attention_forward.1} parent=23 // pred_fallthru
        _
    $region24: #{channel_attention_forward.1} parent=5 // pred_fallthru
      _
    %p155 = scmp.le.s32.totalorder 1, %s9
    %p156 = scmp.lt.s32.totalorder %s9, 3
    %p157 = pnand %p155, %p156
    %p158 = pneg %p157
    // Predicated region
    $region29: #{channel_attention_forward.1} parent=5 // pred_check
      _
    $region30: #{channel_attention_forward.1} parent=5 // pred_check_branch
      %160 = sbr.rel (%p157) target = $region32
    $region31: #{channel_attention_forward.1} parent=5 // pred_region
      %s161 = ssub.s32 %s9, 1
      %s162 = smul.u32 2, %s19
      %p163 = scmp.lt.s32.totalorder %s18, 1
      %s164 = scalar_select %p163, %s18, 1
      %p165 = scmp.lt.s32.totalorder %s162, 1
      %s166 = scalar_select %p165, %s162, 1
      %s167 = smul.addr %s164, 16
      %s168 = sadd.s32 %s166, %s167
      %s169 = smul.addr %s168, 8
      %s170 = scalar_lea.vmem %s0, %s169
      %p171 = pneg %p49
      %p172 = pneg %p46
      %p173 = pneg %p70
      %p174 = pneg %p67
      %p175 = pneg %p91
      %p176 = pneg %p88
      %p177 = pneg %p117
      %p178 = pneg %p114
      %p179 = scmp.lt.s32.totalorder %s18, 1
      %s180 = scalar_select %p179, %s18, 1
      %s181 = smul.addr %s180, 8
      %s182 = smul.addr %s181, 8
      %s183 = scalar_lea.vmem %s3, %s182
      %s184 = smul.u32 2, %s19
      %p185 = scmp.lt.s32.totalorder %s18, 1
      %s186 = scalar_select %p185, %s18, 1
      %p187 = scmp.lt.s32.totalorder %s184, 1
      %s188 = scalar_select %p187, %s184, 1
      %s189 = smul.addr %s186, 16
      %s190 = sadd.s32 %s188, %s189
      %s191 = smul.addr %s190, 8
      %s192 = scalar_lea.vmem %s0, %s191
      %s193 = smul.u32 2, %s19
      %p194 = scmp.lt.s32.totalorder %s18, 1
      %s195 = scalar_select %p194, %s18, 1
      %s196 = smul.addr %s195, 8
      %s197 = smul.addr %s196, 8
      %s198 = scalar_lea.vmem %s3, %s197
      %p199 = scmp.eq.s32.totalorder %s19, 0
      // Predicated region
      $region33: #{channel_attention_forward.1} parent=31 // pred_check
        %p200 = pneg %p199
      $region34: #{channel_attention_forward.1} parent=31 // pred_check_branch
        %202 = sbr.rel (%p200) target = $region36
      $region35: #{channel_attention_forward.1} parent=31 // pred_region
        %203 = vst [vmem:[#allocation2] sm:$0xff] 0.0
        %204 = vst [vmem:[#allocation2 + $0x8] sm:$0xff] 0.0
        %205 = vst [vmem:[#allocation2 + $0x10] sm:$0xff] 0.0
        %206 = vst [vmem:[#allocation2 + $0x18] sm:$0xff] 0.0
        %207 = vst [vmem:[#allocation2 + $0x20] sm:$0xff] 0.0
        %208 = vst [vmem:[#allocation2 + $0x28] sm:$0xff] 0.0
        %209 = vst [vmem:[#allocation2 + $0x30] sm:$0xff] 0.0
        %210 = vst [vmem:[#allocation2 + $0x38] sm:$0xff] 0.0
        %211 = vst [vmem:[#allocation3] sm:$0xff] -inf
        %212 = vst [vmem:[#allocation3 + $0x8] sm:$0xff] -inf
        %213 = vst [vmem:[#allocation3 + $0x10] sm:$0xff] -inf
        %214 = vst [vmem:[#allocation3 + $0x18] sm:$0xff] -inf
        %215 = vst [vmem:[#allocation3 + $0x20] sm:$0xff] -inf
        %216 = vst [vmem:[#allocation3 + $0x28] sm:$0xff] -inf
        %217 = vst [vmem:[#allocation3 + $0x30] sm:$0xff] -inf
        %218 = vst [vmem:[#allocation3 + $0x38] sm:$0xff] -inf
      $region36: #{channel_attention_forward.1} parent=31 // pred_fallthru
        _
      %v219 = vld [vmem:[%s192] sm:$0xff]
      %v220 = vld [vmem:[%s192 + $0x8] sm:$0xff]
      %v221 = vld [vmem:[%s192 + $0x10] sm:$0xff]
      %v222 = vld [vmem:[%s192 + $0x18] sm:$0xff]
      %v223 = vld [vmem:[%s192 + $0x20] sm:$0xff]
      %v224 = vld [vmem:[%s192 + $0x28] sm:$0xff]
      %v225 = vld [vmem:[%s192 + $0x30] sm:$0xff]
      %v226 = vld [vmem:[%s192 + $0x38] sm:$0xff]
      %v227 = vld [vmem:[%s192 + $0x40] sm:$0xff]
      %v228 = vld [vmem:[%s192 + $0x48] sm:$0xff]
      %v229 = vld [vmem:[%s192 + $0x50] sm:$0xff]
      %v230 = vld [vmem:[%s192 + $0x58] sm:$0xff]
      %v231 = vld [vmem:[%s192 + $0x60] sm:$0xff]
      %v232 = vld [vmem:[%s192 + $0x68] sm:$0xff]
      %v233 = vld [vmem:[%s192 + $0x70] sm:$0xff]
      %v234 = vld [vmem:[%s192 + $0x78] sm:$0xff]
      %v235 = vadd.f32 %v219, %v220
      %v236 = vadd.f32 %v221, %v222
      %v237 = vadd.f32 %v223, %v224
      %v238 = vadd.f32 %v225, %v226
      %v239 = vadd.f32 %v227, %v228
      %v240 = vadd.f32 %v229, %v230
      %v241 = vadd.f32 %v231, %v232
      %v242 = vadd.f32 %v233, %v234
      %v243 = vmax.f32 %v219, %v220
      %v244 = vmax.f32 %v221, %v222
      %v245 = vmax.f32 %v223, %v224
      %v246 = vmax.f32 %v225, %v226
      %v247 = vmax.f32 %v227, %v228
      %v248 = vmax.f32 %v229, %v230
      %v249 = vmax.f32 %v231, %v232
      %v250 = vmax.f32 %v233, %v234
      %v251 = vld [vmem:[#allocation2] sm:$0xff]
      %v252 = vld [vmem:[#allocation2 + $0x8] sm:$0xff]
      %v253 = vld [vmem:[#allocation2 + $0x10] sm:$0xff]
      %v254 = vld [vmem:[#allocation2 + $0x18] sm:$0xff]
      %v255 = vld [vmem:[#allocation2 + $0x20] sm:$0xff]
      %v256 = vld [vmem:[#allocation2 + $0x28] sm:$0xff]
      %v257 = vld [vmem:[#allocation2 + $0x30] sm:$0xff]
      %v258 = vld [vmem:[#allocation2 + $0x38] sm:$0xff]
      %v259 = vadd.f32 %v251, %v235
      %v260 = vadd.f32 %v252, %v236
      %v261 = vadd.f32 %v253, %v237
      %v262 = vadd.f32 %v254, %v238
      %v263 = vadd.f32 %v255, %v239
      %v264 = vadd.f32 %v256, %v240
      %v265 = vadd.f32 %v257, %v241
      %v266 = vadd.f32 %v258, %v242
      %267 = vst [vmem:[#allocation2] sm:$0xff] %v259
      %268 = vst [vmem:[#allocation2 + $0x8] sm:$0xff] %v260
      %269 = vst [vmem:[#allocation2 + $0x10] sm:$0xff] %v261
      %270 = vst [vmem:[#allocation2 + $0x18] sm:$0xff] %v262
      %271 = vst [vmem:[#allocation2 + $0x20] sm:$0xff] %v263
      %272 = vst [vmem:[#allocation2 + $0x28] sm:$0xff] %v264
      %273 = vst [vmem:[#allocation2 + $0x30] sm:$0xff] %v265
      %274 = vst [vmem:[#allocation2 + $0x38] sm:$0xff] %v266
      %v275 = vld [vmem:[#allocation3] sm:$0xff]
      %v276 = vld [vmem:[#allocation3 + $0x8] sm:$0xff]
      %v277 = vld [vmem:[#allocation3 + $0x10] sm:$0xff]
      %v278 = vld [vmem:[#allocation3 + $0x18] sm:$0xff]
      %v279 = vld [vmem:[#allocation3 + $0x20] sm:$0xff]
      %v280 = vld [vmem:[#allocation3 + $0x28] sm:$0xff]
      %v281 = vld [vmem:[#allocation3 + $0x30] sm:$0xff]
      %v282 = vld [vmem:[#allocation3 + $0x38] sm:$0xff]
      %v283 = vmax.f32 %v275, %v243
      %v284 = vmax.f32 %v276, %v244
      %v285 = vmax.f32 %v277, %v245
      %v286 = vmax.f32 %v278, %v246
      %v287 = vmax.f32 %v279, %v247
      %v288 = vmax.f32 %v280, %v248
      %v289 = vmax.f32 %v281, %v249
      %v290 = vmax.f32 %v282, %v250
      %291 = vst [vmem:[#allocation3] sm:$0xff] %v283
      %292 = vst [vmem:[#allocation3 + $0x8] sm:$0xff] %v284
      %293 = vst [vmem:[#allocation3 + $0x10] sm:$0xff] %v285
      %294 = vst [vmem:[#allocation3 + $0x18] sm:$0xff] %v286
      %295 = vst [vmem:[#allocation3 + $0x20] sm:$0xff] %v287
      %296 = vst [vmem:[#allocation3 + $0x28] sm:$0xff] %v288
      %297 = vst [vmem:[#allocation3 + $0x30] sm:$0xff] %v289
      %298 = vst [vmem:[#allocation3 + $0x38] sm:$0xff] %v290
      // Predicated region
      $region37: #{channel_attention_forward.1} parent=31 // pred_check
        %p299 = pneg %p199
      $region38: #{channel_attention_forward.1} parent=31 // pred_check_branch
        %301 = sbr.rel (%p299) target = $region40
      $region39: #{channel_attention_forward.1} parent=31 // pred_region
        %v302 = vld [vmem:[#allocation2] sm:$0xff]
        %v303 = vld [vmem:[#allocation2 + $0x8] sm:$0xff]
        %v304 = vld [vmem:[#allocation2 + $0x10] sm:$0xff]
        %v305 = vld [vmem:[#allocation2 + $0x18] sm:$0xff]
        %v306 = vld [vmem:[#allocation2 + $0x20] sm:$0xff]
        %v307 = vld [vmem:[#allocation2 + $0x28] sm:$0xff]
        %v308 = vld [vmem:[#allocation2 + $0x30] sm:$0xff]
        %v309 = vld [vmem:[#allocation2 + $0x38] sm:$0xff]
        %310 = vadd.xlane.f32.xlu0 %v302
        %v311 = vpop.xlane.xlu0 %310
        %312 = vadd.xlane.f32.xlu0 %v303
        %v313 = vpop.xlane.xlu0 %312
        %314 = vadd.xlane.f32.xlu0 %v304
        %v315 = vpop.xlane.xlu0 %314
        %316 = vadd.xlane.f32.xlu0 %v305
        %v317 = vpop.xlane.xlu0 %316
        %318 = vadd.xlane.f32.xlu0 %v306
        %v319 = vpop.xlane.xlu0 %318
        %320 = vadd.xlane.f32.xlu0 %v307
        %v321 = vpop.xlane.xlu0 %320
        %322 = vadd.xlane.f32.xlu0 %v308
        %v323 = vpop.xlane.xlu0 %322
        %324 = vadd.xlane.f32.xlu0 %v309
        %v325 = vpop.xlane.xlu0 %324
        %v326 = vmul.f32 %v311, 0.00390625
        %v327 = vmul.f32 %v313, 0.00390625
        %v328 = vmul.f32 %v315, 0.00390625
        %v329 = vmul.f32 %v317, 0.00390625
        %v330 = vmul.f32 %v319, 0.00390625
        %v331 = vmul.f32 %v321, 0.00390625
        %v332 = vmul.f32 %v323, 0.00390625
        %v333 = vmul.f32 %v325, 0.00390625
        %v334 = vld [vmem:[#allocation3] sm:$0xff]
        %v335 = vld [vmem:[#allocation3 + $0x8] sm:$0xff]
        %v336 = vld [vmem:[#allocation3 + $0x10] sm:$0xff]
        %v337 = vld [vmem:[#allocation3 + $0x18] sm:$0xff]
        %v338 = vld [vmem:[#allocation3 + $0x20] sm:$0xff]
        %v339 = vld [vmem:[#allocation3 + $0x28] sm:$0xff]
        %v340 = vld [vmem:[#allocation3 + $0x30] sm:$0xff]
        %v341 = vld [vmem:[#allocation3 + $0x38] sm:$0xff]
        %342 = vmax.xlane.f32.xlu0 %v334
        %v343 = vpop.xlane.xlu0 %342
        %344 = vmax.xlane.f32.xlu0 %v335
        %v345 = vpop.xlane.xlu0 %344
        %346 = vmax.xlane.f32.xlu0 %v336
        %v347 = vpop.xlane.xlu0 %346
        %348 = vmax.xlane.f32.xlu0 %v337
        %v349 = vpop.xlane.xlu0 %348
        %350 = vmax.xlane.f32.xlu0 %v338
        %v351 = vpop.xlane.xlu0 %350
        %352 = vmax.xlane.f32.xlu0 %v339
        %v353 = vpop.xlane.xlu0 %352
        %354 = vmax.xlane.f32.xlu0 %v340
        %v355 = vpop.xlane.xlu0 %354
        %356 = vmax.xlane.f32.xlu0 %v341
        %v357 = vpop.xlane.xlu0 %356
        %v358 = vld [vmem:[%s1] sm:$0xf]
        %v359 = vld [vmem:[%s2] sm:$0xff]
        %v360 = vld [vmem:[%s2 + $0x8] sm:$0xff]
        %v361 = vld [vmem:[%s2 + $0x10] sm:$0xff]
        %v362 = vld [vmem:[%s2 + $0x18] sm:$0xff]
        %v363 = vld [vmem:[%s2 + $0x20] sm:$0xff]
        %v364 = vld [vmem:[%s2 + $0x28] sm:$0xff]
        %v365 = vld [vmem:[%s2 + $0x30] sm:$0xff]
        %v366 = vld [vmem:[%s2 + $0x38] sm:$0xff]
        %vm367 = vcmask 523264
        %v369 = vsel %vm367, %v358, 0
        %371 = vmatprep.subr.mxu0 0.0
        %372 = vmatpush1.msra.mxu0 %v326
        %373 = vmatprep.subr.mxu0 0.0
        %374 = vmatpush1.msra.mxu0 %v327
        %375 = vmatprep.subr.mxu0 0.0
        %376 = vmatpush1.msra.mxu0 %v328
        %377 = vmatprep.subr.mxu0 0.0
        %378 = vmatpush1.msra.mxu0 %v329
        %379 = vmatprep.subr.mxu0 0.0
        %380 = vmatpush1.msra.mxu0 %v330
        %381 = vmatprep.subr.mxu0 0.0
        %382 = vmatpush1.msra.mxu0 %v331
        %383 = vmatprep.subr.mxu0 0.0
        %384 = vmatpush1.msra.mxu0 %v332
        %385 = vmatprep.subr.mxu0 0.0
        %386 = vmatpush1.msra.mxu0 %v333
        %387 = vmatprep.subr.mxu0 0.0
        %388 = vmatpush1.msra.mxu0 0.0
        %389 = vmatprep.subr.mxu0 0.0
        %390 = vmatpush1.msra.mxu0 0.0
        %391 = vmatprep.subr.mxu0 0.0
        %392 = vmatpush1.msra.mxu0 0.0
        %393 = vmatprep.subr.mxu0 0.0
        %394 = vmatpush1.msra.mxu0 0.0
        %395 = vmatprep.subr.mxu0 0.0
        %396 = vmatpush1.msra.mxu0 0.0
        %397 = vmatprep.subr.mxu0 0.0
        %398 = vmatpush1.msra.mxu0 0.0
        %399 = vmatprep.subr.mxu0 0.0
        %400 = vmatpush1.msra.mxu0 0.0
        %401 = vmatprep.subr.mxu0 0.0
        %402 = vmatpush1.msra.mxu0 0.0
        %403 = vmatprep.subr.mxu0 0.0
        %404 = vmatpush1.msra.mxu0 0.0
        %405 = vmatprep.subr.mxu0 0.0
        %406 = vmatpush1.msra.mxu0 0.0
        %407 = vmatprep.subr.mxu0 0.0
        %408 = vmatpush1.msra.mxu0 0.0
        %409 = vmatprep.subr.mxu0 0.0
        %410 = vmatpush1.msra.mxu0 0.0
        %411 = vmatprep.subr.mxu0 0.0
        %412 = vmatpush1.msra.mxu0 0.0
        %413 = vmatprep.subr.mxu0 0.0
        %414 = vmatpush1.msra.mxu0 0.0
        %415 = vmatprep.subr.mxu0 0.0
        %416 = vmatpush1.msra.mxu0 0.0
        %417 = vmatprep.subr.mxu0 0.0
        %418 = vmatpush1.msra.mxu0 0.0
        %419 = vmatprep.subr.mxu0 0.0
        %420 = vmatpush1.msra.mxu0 0.0
        %421 = vmatprep.subr.mxu0 0.0
        %422 = vmatpush1.msra.mxu0 0.0
        %423 = vmatprep.subr.mxu0 0.0
        %424 = vmatpush1.msra.mxu0 0.0
        %425 = vmatprep.subr.mxu0 0.0
        %426 = vmatpush1.msra.mxu0 0.0
        %427 = vmatprep.subr.mxu0 0.0
        %428 = vmatpush1.msra.mxu0 0.0
        %429 = vmatprep.subr.mxu0 0.0
        %430 = vmatpush1.msra.mxu0 0.0
        %431 = vmatprep.subr.mxu0 0.0
        %432 = vmatpush1.msra.mxu0 0.0
        %433 = vmatprep.subr.mxu0 0.0
        %434 = vmatpush1.msra.mxu0 0.0
        %435 = vmatprep.mubr.f32.mxu0 0.0
        %436 = vmatmul.mubr.f32.gmra.mrb[0].mxu0 %v369
        %v437 = vpop.f32.mrb[0].mxu0
        %v438 = vadd.f32 0.0, %v437
        %v439 = vpop.f32.mrb[0].mxu0
        %440 = vdwg.mxu0
        %v441 = vmax.f32 %v438, 0.0
        %442 = vmatprep.subr.mxu0 0.0
        %443 = vmatpush1.msra.mxu0 %v343
        %444 = vmatprep.subr.mxu0 0.0
        %445 = vmatpush1.msra.mxu0 %v345
        %446 = vmatprep.subr.mxu0 0.0
        %447 = vmatpush1.msra.mxu0 %v347
        %448 = vmatprep.subr.mxu0 0.0
        %449 = vmatpush1.msra.mxu0 %v349
        %450 = vmatprep.subr.mxu0 0.0
        %451 = vmatpush1.msra.mxu0 %v351
        %452 = vmatprep.subr.mxu0 0.0
        %453 = vmatpush1.msra.mxu0 %v353
        %454 = vmatprep.subr.mxu0 0.0
        %455 = vmatpush1.msra.mxu0 %v355
        %456 = vmatprep.subr.mxu0 0.0
        %457 = vmatpush1.msra.mxu0 %v357
        %458 = vmatprep.subr.mxu0 0.0
        %459 = vmatpush1.msra.mxu0 0.0
        %460 = vmatprep.subr.mxu0 0.0
        %461 = vmatpush1.msra.mxu0 0.0
        %462 = vmatprep.subr.mxu0 0.0
        %463 = vmatpush1.msra.mxu0 0.0
        %464 = vmatprep.subr.mxu0 0.0
        %465 = vmatpush1.msra.mxu0 0.0
        %466 = vmatprep.subr.mxu0 0.0
        %467 = vmatpush1.msra.mxu0 0.0
        %468 = vmatprep.subr.mxu0 0.0
        %469 = vmatpush1.msra.mxu0 0.0
        %470 = vmatprep.subr.mxu0 0.0
        %471 = vmatpush1.msra.mxu0 0.0
        %472 = vmatprep.subr.mxu0 0.0
        %473 = vmatpush1.msra.mxu0 0.0
        %474 = vmatprep.subr.mxu0 0.0
        %475 = vmatpush1.msra.mxu0 0.0
        %476 = vmatprep.subr.mxu0 0.0
        %477 = vmatpush1.msra.mxu0 0.0
        %478 = vmatprep.subr.mxu0 0.0
        %479 = vmatpush1.msra.mxu0 0.0
        %480 = vmatprep.subr.mxu0 0.0
        %481 = vmatpush1.msra.mxu0 0.0
        %482 = vmatprep.subr.mxu0 0.0
        %483 = vmatpush1.msra.mxu0 0.0
        %484 = vmatprep.subr.mxu0 0.0
        %485 = vmatpush1.msra.mxu0 0.0
        %486 = vmatprep.subr.mxu0 0.0
        %487 = vmatpush1.msra.mxu0 0.0
        %488 = vmatprep.subr.mxu0 0.0
        %489 = vmatpush1.msra.mxu0 0.0
        %490 = vmatprep.subr.mxu0 0.0
        %491 = vmatpush1.msra.mxu0 0.0
        %492 = vmatprep.subr.mxu0 0.0
        %493 = vmatpush1.msra.mxu0 0.0
        %494 = vmatprep.subr.mxu0 0.0
        %495 = vmatpush1.msra.mxu0 0.0
        %496 = vmatprep.subr.mxu0 0.0
        %497 = vmatpush1.msra.mxu0 0.0
        %498 = vmatprep.subr.mxu0 0.0
        %499 = vmatpush1.msra.mxu0 0.0
        %500 = vmatprep.subr.mxu0 0.0
        %501 = vmatpush1.msra.mxu0 0.0
        %502 = vmatprep.subr.mxu0 0.0
        %503 = vmatpush1.msra.mxu0 0.0
        %504 = vmatprep.subr.mxu0 0.0
        %505 = vmatpush1.msra.mxu0 0.0
        %506 = vmatprep.mubr.f32.mxu0 0.0
        %507 = vmatmul.mubr.f32.gmra.mrb[0].mxu0 %v369
        %v508 = vpop.f32.mrb[0].mxu0
        %v509 = vadd.f32 0.0, %v508
        %v510 = vpop.f32.mrb[0].mxu0
        %511 = vdwg.mxu0
        %v512 = vmax.f32 %v509, 0.0
        %v513 = vadd.f32 %v441, %v512
        %vm514 = vcmask 31744
        %v516 = vsel %vm514, %v359, 0
        %v519 = vsel %vm514, %v360, 0
        %v522 = vsel %vm514, %v361, 0
        %v525 = vsel %vm514, %v362, 0
        %v528 = vsel %vm514, %v363, 0
        %v531 = vsel %vm514, %v364, 0
        %v534 = vsel %vm514, %v365, 0
        %v537 = vsel %vm514, %v366, 0
        %vm539 = vcmask 1043456
        %v541 = vsel %vm539, %v513, 0
        %543 = vmatprep.subr.mxu0 0.0
        %544 = vmatpush1.msra.mxu0 %v541
        %545 = vmatprep.subr.mxu0 0.0
        %546 = vmatpush1.msra.mxu0 0.0
        %547 = vmatprep.subr.mxu0 0.0
        %548 = vmatpush1.msra.mxu0 0.0
        %549 = vmatprep.subr.mxu0 0.0
        %550 = vmatpush1.msra.mxu0 0.0
        %551 = vmatprep.subr.mxu0 0.0
        %552 = vmatpush1.msra.mxu0 0.0
        %553 = vmatprep.subr.mxu0 0.0
        %554 = vmatpush1.msra.mxu0 0.0
        %555 = vmatprep.subr.mxu0 0.0
        %556 = vmatpush1.msra.mxu0 0.0
        %557 = vmatprep.subr.mxu0 0.0
        %558 = vmatpush1.msra.mxu0 0.0
        %559 = vmatprep.subr.mxu0 0.0
        %560 = vmatpush1.msra.mxu0 0.0
        %561 = vmatprep.subr.mxu0 0.0
        %562 = vmatpush1.msra.mxu0 0.0
        %563 = vmatprep.subr.mxu0 0.0
        %564 = vmatpush1.msra.mxu0 0.0
        %565 = vmatprep.subr.mxu0 0.0
        %566 = vmatpush1.msra.mxu0 0.0
        %567 = vmatprep.subr.mxu0 0.0
        %568 = vmatpush1.msra.mxu0 0.0
        %569 = vmatprep.subr.mxu0 0.0
        %570 = vmatpush1.msra.mxu0 0.0
        %571 = vmatprep.subr.mxu0 0.0
        %572 = vmatpush1.msra.mxu0 0.0
        %573 = vmatprep.subr.mxu0 0.0
        %574 = vmatpush1.msra.mxu0 0.0
        %575 = vmatprep.subr.mxu0 0.0
        %576 = vmatpush1.msra.mxu0 0.0
        %577 = vmatprep.subr.mxu0 0.0
        %578 = vmatpush1.msra.mxu0 0.0
        %579 = vmatprep.subr.mxu0 0.0
        %580 = vmatpush1.msra.mxu0 0.0
        %581 = vmatprep.subr.mxu0 0.0
        %582 = vmatpush1.msra.mxu0 0.0
        %583 = vmatprep.subr.mxu0 0.0
        %584 = vmatpush1.msra.mxu0 0.0
        %585 = vmatprep.subr.mxu0 0.0
        %586 = vmatpush1.msra.mxu0 0.0
        %587 = vmatprep.subr.mxu0 0.0
        %588 = vmatpush1.msra.mxu0 0.0
        %589 = vmatprep.subr.mxu0 0.0
        %590 = vmatpush1.msra.mxu0 0.0
        %591 = vmatprep.subr.mxu0 0.0
        %592 = vmatpush1.msra.mxu0 0.0
        %593 = vmatprep.subr.mxu0 0.0
        %594 = vmatpush1.msra.mxu0 0.0
        %595 = vmatprep.subr.mxu0 0.0
        %596 = vmatpush1.msra.mxu0 0.0
        %597 = vmatprep.subr.mxu0 0.0
        %598 = vmatpush1.msra.mxu0 0.0
        %599 = vmatprep.subr.mxu0 0.0
        %600 = vmatpush1.msra.mxu0 0.0
        %601 = vmatprep.subr.mxu0 0.0
        %602 = vmatpush1.msra.mxu0 0.0
        %603 = vmatprep.subr.mxu0 0.0
        %604 = vmatpush1.msra.mxu0 0.0
        %605 = vmatprep.subr.mxu0 0.0
        %606 = vmatpush1.msra.mxu0 0.0
        %607 = vmatprep.mubr.f32.mxu0 0.0
        %608 = vmatmul.mubr.f32.gmra.mrb[0].mxu0 %v516
        %v609 = vpop.f32.mrb[0].mxu0
        %v610 = vadd.f32 0.0, %v609
        %v611 = vpop.f32.mrb[0].mxu0
        %612 = vmatprep.mubr.f32.mxu0 0.0
        %613 = vmatmul.mubr.f32.gmra.mrb[0].mxu0 %v519
        %v614 = vpop.f32.mrb[0].mxu0
        %v615 = vadd.f32 0.0, %v614
        %v616 = vpop.f32.mrb[0].mxu0
        %617 = vmatprep.mubr.f32.mxu0 0.0
        %618 = vmatmul.mubr.f32.gmra.mrb[0].mxu0 %v522
        %v619 = vpop.f32.mrb[0].mxu0
        %v620 = vadd.f32 0.0, %v619
        %v621 = vpop.f32.mrb[0].mxu0
        %622 = vmatprep.mubr.f32.mxu0 0.0
        %623 = vmatmul.mubr.f32.gmra.mrb[0].mxu0 %v525
        %v624 = vpop.f32.mrb[0].mxu0
        %v625 = vadd.f32 0.0, %v624
        %v626 = vpop.f32.mrb[0].mxu0
        %627 = vmatprep.mubr.f32.mxu0 0.0
        %628 = vmatmul.mubr.f32.gmra.mrb[0].mxu0 %v528
        %v629 = vpop.f32.mrb[0].mxu0
        %v630 = vadd.f32 0.0, %v629
        %v631 = vpop.f32.mrb[0].mxu0
        %632 = vmatprep.mubr.f32.mxu0 0.0
        %633 = vmatmul.mubr.f32.gmra.mrb[0].mxu0 %v531
        %v634 = vpop.f32.mrb[0].mxu0
        %v635 = vadd.f32 0.0, %v634
        %v636 = vpop.f32.mrb[0].mxu0
        %637 = vmatprep.mubr.f32.mxu0 0.0
        %638 = vmatmul.mubr.f32.gmra.mrb[0].mxu0 %v534
        %v639 = vpop.f32.mrb[0].mxu0
        %v640 = vadd.f32 0.0, %v639
        %v641 = vpop.f32.mrb[0].mxu0
        %642 = vmatprep.mubr.f32.mxu0 0.0
        %643 = vmatmul.mubr.f32.gmra.mrb[0].mxu0 %v537
        %v644 = vpop.f32.mrb[0].mxu0
        %v645 = vadd.f32 0.0, %v644
        %v646 = vpop.f32.mrb[0].mxu0
        %647 = vdwg.mxu0
        %v648 = vxor.u32 %v610, 2147483648
        %v649 = vxor.u32 %v615, 2147483648
        %v650 = vxor.u32 %v620, 2147483648
        %v651 = vxor.u32 %v625, 2147483648
        %v652 = vxor.u32 %v630, 2147483648
        %v653 = vxor.u32 %v635, 2147483648
        %v654 = vxor.u32 %v640, 2147483648
        %v655 = vxor.u32 %v645, 2147483648
        %v656 = vmul.f32 %v648, 1.442695
        %v657 = vpow.pop %v656
        %v658 = vmul.f32 %v649, 1.442695
        %v659 = vpow.pop %v658
        %v660 = vmul.f32 %v650, 1.442695
        %v661 = vpow.pop %v660
        %v662 = vmul.f32 %v651, 1.442695
        %v663 = vpow.pop %v662
        %v664 = vmul.f32 %v652, 1.442695
        %v665 = vpow.pop %v664
        %v666 = vmul.f32 %v653, 1.442695
        %v667 = vpow.pop %v666
        %v668 = vmul.f32 %v654, 1.442695
        %v669 = vpow.pop %v668
        %v670 = vmul.f32 %v655, 1.442695
        %v671 = vpow.pop %v670
        %v672 = vadd.f32 %v657, 1.0
        %v673 = vadd.f32 %v659, 1.0
        %v674 = vadd.f32 %v661, 1.0
        %v675 = vadd.f32 %v663, 1.0
        %v676 = vadd.f32 %v665, 1.0
        %v677 = vadd.f32 %v667, 1.0
        %v678 = vadd.f32 %v669, 1.0
        %v679 = vadd.f32 %v671, 1.0
        %v680 = vrcp.pop %v672
        %v681 = vmul.f32 1.0, %v680
        %v682 = vrcp.pop %v673
        %v683 = vmul.f32 1.0, %v682
        %v684 = vrcp.pop %v674
        %v685 = vmul.f32 1.0, %v684
        %v686 = vrcp.pop %v675
        %v687 = vmul.f32 1.0, %v686
        %v688 = vrcp.pop %v676
        %v689 = vmul.f32 1.0, %v688
        %v690 = vrcp.pop %v677
        %v691 = vmul.f32 1.0, %v690
        %v692 = vrcp.pop %v678
        %v693 = vmul.f32 1.0, %v692
        %v694 = vrcp.pop %v679
        %v695 = vmul.f32 1.0, %v694
        %vm696 = vcmask 7168
        %697 = vst.msk [vmem:[%s198] sm:$0xff] %vm696, %v681
        %698 = vst.msk [vmem:[%s198 + $0x8] sm:$0xff] %vm696, %v683
        %699 = vst.msk [vmem:[%s198 + $0x10] sm:$0xff] %vm696, %v685
        %700 = vst.msk [vmem:[%s198 + $0x18] sm:$0xff] %vm696, %v687
        %701 = vst.msk [vmem:[%s198 + $0x20] sm:$0xff] %vm696, %v689
        %702 = vst.msk [vmem:[%s198 + $0x28] sm:$0xff] %vm696, %v691
        %703 = vst.msk [vmem:[%s198 + $0x30] sm:$0xff] %vm696, %v693
        %704 = vst.msk [vmem:[%s198 + $0x38] sm:$0xff] %vm696, %v695
      $region40: #{channel_attention_forward.1} parent=31 // pred_fallthru
        _
      %p705 = scmp.lt.s32.totalorder %s18, 1
      %s706 = scalar_select %p705, %s18, 1
      %s707 = smul.addr %s706, 8
      %s708 = smul.addr %s707, 8
      %s709 = scalar_lea.vmem %s3, %s708
      // Predicated region
      $region41: #{channel_attention_forward.1} parent=31 // pred_check
        %p710 = pneg %p114
      $region42: #{channel_attention_forward.1} parent=31 // pred_check_branch
        %712 = sbr.rel (%p710) target = $region44
      $region43: #{channel_attention_forward.1} parent=31 // pred_region
        _
      $region44: #{channel_attention_forward.1} parent=31 // pred_fallthru
        _
    $region32: #{channel_attention_forward.1} parent=5 // pred_fallthru
      _
    %p713 = scmp.le.s32.totalorder 2, %s9
    // Predicated region
    $region45: #{channel_attention_forward.1} parent=5 // pred_check
      %p714 = pneg %p713
    $region46: #{channel_attention_forward.1} parent=5 // pred_check_branch
      %716 = sbr.rel (%p714) target = $region48
    $region47: #{channel_attention_forward.1} parent=5 // pred_region
      %s717 = ssub.s32 %s9, 2
      // Predicated region
      $region49: #{channel_attention_forward.1} parent=47 // pred_check
        %p718 = pneg %p120
      $region50: #{channel_attention_forward.1} parent=47 // pred_check_branch
        %720 = sbr.rel (%p718) target = $region52
      $region51: #{channel_attention_forward.1} parent=47 // pred_region
        %p721 = scmp.lt.s32.totalorder %s20, 1
        %s722 = scalar_select %p721, %s20, 1
        %s723 = smul.addr %s722, 8
        %s724 = smul.addr %s723, 8
        %s725 = scalar_lea.vmem %s3, %s724
      $region52: #{channel_attention_forward.1} parent=47 // pred_fallthru
        _
    $region48: #{channel_attention_forward.1} parent=5 // pred_fallthru
      _
  $region6: #{channel_attention_forward.1} parent=0 // loop_footer
    %s13 = sadd.s32 1, %s9
  $region7: #{channel_attention_forward.1} parent=0 // loop_footer_branch
    %8 = sbr.rel target = $region3
  $region8: #{channel_attention_forward.1} parent=0 // loop_exit
    _

</llo_original>
